<compile_context>
chip_gen: v6e
topology: v6e:2x2x1
jax: 0.10.0
libtpu: 0.0.40
codegen_flags: <defaults>
</compile_context>

<pallas_src>
import jax
import jax.numpy as jnp
import numpy as np
from jax.experimental import pallas as pl
from jax.experimental.pallas import tpu as pltpu

NC = 3          # synthetic number of classes
NO = 5 + NC     # per-anchor outputs: [x, y, w, h, obj, cls0..cls2]  (== 8 sublanes)


# ---------------------------------------------------------------------------
# Fused kernel: (/255 folded) pointwise head + sigmoid + Detections math
# ---------------------------------------------------------------------------
def _make_fused_kernel(inv_w: float, inv_h: float, n_ch: int):
    """inv_w/inv_h are static 1/W, 1/H reciprocals of gn = [W, H, W, H, 1, 1]."""

    def kernel(w_ref, b_ref, x_ref, y_ref, xywh_ref, xyxyn_ref, xywhn_ref):
        # w_ref : (NO, C)  f32 VMEM, already scaled by 1/255
        # b_ref : (NO, 1)  f32 VMEM
        # x_ref : (1, C, T) uint8 pixel tile (channels-first, lane-dense over pixels)
        x = x_ref[0].astype(jnp.float32)                     # (C, T)
        w = w_ref[...]                                       # (NO, C)

        # Dense VPU splat-FMA head: acc[o, p] = sum_c w[o, c] * x[c, p] + b[o]
        # (NO,1) * (1,T) -> (NO, T): lane-broadcast of the weight column, sublane-broadcast
        # of the pixel row.  Fully unrolled over the C=3 channels.
        acc = w[:, 0:1] * x[0:1, :]
        for c in range(1, n_ch):
            acc = acc + w[:, c:c + 1] * x[c:c + 1, :]
        acc = acc + b_ref[...]                               # (NO, 1) lane-broadcast

        # sigmoid via the tanh identity: single EUP op, no f32 divide on the VALU.
        y = 0.5 * jnp.tanh(0.5 * acc) + 0.5                  # (NO, T)
        y_ref[0] = y                                         # dense, full-sublane store

        # ---- Detections math, kept dense on the (NO, T) slab -------------------
        # Rows 0..5 are treated as placeholder post-NMS [x1, y1, x2, y2, conf, cls].
        row = jax.lax.broadcasted_iota(jnp.int32, y.shape, 0)
        up2 = jnp.roll(y, -2, axis=0)    # row i <- y[i+2]   (sublane rotate)
        down2 = jnp.roll(y, 2, axis=0)   # row i <- y[i-2]
        # rows 0,1: box centers; rows 2,3: width/height; rows >=4: passthrough
        xywh = jnp.where(row < 2, 0.5 * (y + up2),
                         jnp.where(row < 4, y - down2, y))   # (NO, T)

        # gn = [W, H, W, H, 1, 1] division replaced by multiply with static reciprocals
        inv_gn = jnp.where((row == 0) | (row == 2), inv_w,
                           jnp.where((row == 1) | (row == 3), inv_h, 1.0))

        # Cast on the dense (8, T) slab, then slice the 6 detection rows for the store.
        xywh_ref[0] = xywh.astype(xywh_ref.dtype)[:6, :]
        xyxyn_ref[0] = (y * inv_gn).astype(xyxyn_ref.dtype)[:6, :]
        xywhn_ref[0] = (xywh * inv_gn).astype(xywhn_ref.dtype)[:6, :]

    return kernel


# ---------------------------------------------------------------------------
# Tile selection: largest lane-aligned divisor of HW (no ragged remainder ever)
# ---------------------------------------------------------------------------
def _pick_tile(hw: int, target: int) -> int:
    top = min(target, hw)
    top -= top % 128
    for t in range(top, 0, -128):
        if hw % t == 0:
            return t
    return hw   # single full-row tile; always a legal block (equals the full dim)


# ---------------------------------------------------------------------------
# AutoShape-style wrapper
# ---------------------------------------------------------------------------
def autoshape_forward(imgs_u8_nchw, weight, bias, *, tile=8192,
                      norm_dtype=jnp.bfloat16):
    """imgs_u8_nchw: (B, C, H, W) uint8 (the NCHW tensor the wrapped model sees).
    weight: (C, NO) f32, bias: (NO,) or (1, NO) f32.

    Returns:
      y      (B, NO, HW) f32        sigmoid head output (xyxy == y[:, :6, :])
      xywh   (B, 6, HW)  f32
      xyxyn  (B, 6, HW)  norm_dtype (bf16 by default: values are [0,1]-normalized)
      xywhn  (B, 6, HW)  norm_dtype
    """
    B, C, H, W = imgs_u8_nchw.shape
    HW = H * W
    T = _pick_tile(HW, tile)

    x = imgs_u8_nchw.reshape(B, C, HW)                        # contiguous -> free reshape
    w_scaled = jnp.asarray(weight, jnp.float32).T / 255.0     # fold /255 -> (NO, C)
    b_col = jnp.asarray(bias, jnp.float32).reshape(NO, 1)     # (NO, 1)

    kernel = _make_fused_kernel(1.0 / W, 1.0 / H, C)
    det_f32 = jax.ShapeDtypeStruct((B, 6, HW), jnp.float32)
    det_nrm = jax.ShapeDtypeStruct((B, 6, HW), norm_dtype)

    return pl.pallas_call(
        kernel,
        out_shape=(
            jax.ShapeDtypeStruct((B, NO, HW), jnp.float32),
            det_f32, det_nrm, det_nrm,
        ),
        grid=(B, HW // T),
        in_specs=[
            pl.BlockSpec((NO, C), lambda b, t: (0, 0)),        # weight: tiny VMEM block
            pl.BlockSpec((NO, 1), lambda b, t: (0, 0)),        # bias:   tiny VMEM block
            pl.BlockSpec((1, C, T), lambda b, t: (b, 0, t)),   # uint8 pixel tile
        ],
        out_specs=(
            pl.BlockSpec((1, NO, T), lambda b, t: (b, 0, t)),
            pl.BlockSpec((1, 6, T), lambda b, t: (b, 0, t)),
            pl.BlockSpec((1, 6, T), lambda b, t: (b, 0, t)),
            pl.BlockSpec((1, 6, T), lambda b, t: (b, 0, t)),
        ),
        compiler_params=pltpu.CompilerParams(
            dimension_semantics=("parallel", "parallel")),
    )(w_scaled, b_col, x)


if __name__ == "__main__":
    key = jax.random.PRNGKey(0)
    k_img, k_w, k_b = jax.random.split(key, 3)

    B, C, H, W = 2, 3, 32, 32
    imgs = jax.random.randint(k_img, (B, C, H, W), 0, 256, dtype=jnp.int32).astype(jnp.uint8)
    weight = (jax.random.normal(k_w, (C, NO)) * 0.1).astype(jnp.float32)
    bias = (jax.random.normal(k_b, (NO,)) * 0.1).astype(jnp.float32)

    y, xywh, xyxyn, xywhn = jax.block_until_ready(
        autoshape_forward(imgs, weight, bias))

    # ------------------------- pure-JAX reference -------------------------
    x_f = imgs.astype(jnp.float32).reshape(B, C, H * W) / 255.0            # (B, C, HW)
    logits = jnp.einsum("co,bcn->bon", weight, x_f) + bias[None, :, None]
    y_ref = jax.nn.sigmoid(logits)                                         # (B, NO, HW)
    p = y_ref[:, :6, :]                                                    # xyxy,conf,cls
    px1, py1, px2, py2 = p[:, 0:1], p[:, 1:2], p[:, 2:3], p[:, 3:4]
    rest = p[:, 4:6]
    xywh_ref = jnp.concatenate(
        [(px1 + px2) * 0.5, (py1 + py2) * 0.5, px2 - px1, py2 - py1, rest], axis=1)
    gn = jnp.array([W, H, W, H, 1.0, 1.0], jnp.float32)[None, :, None]

    np.testing.assert_allclose(np.asarray(y), np.asarray(y_ref),
                               rtol=1e-4, atol=1e-5)
    np.testing.assert_allclose(np.asarray(xywh), np.asarray(xywh_ref),
                               rtol=1e-4, atol=1e-5)
    np.testing.assert_allclose(np.asarray(xyxyn.astype(jnp.float32)),
                               np.asarray(p / gn), rtol=1e-2, atol=1e-2)
    np.testing.assert_allclose(np.asarray(xywhn.astype(jnp.float32)),
                               np.asarray(xywh_ref / gn), rtol=1e-2, atol=1e-2)

    print("KERNEL_OK")
</pallas_src>

<mosaic_0001>
module attributes {stable_mosaic.version = 11 : i64} {
  func.func @kernel(%arg0: i32, %arg1: i32, %arg2: memref<8x3xf32, #tpu.memory_space<vmem>>, %arg3: memref<8x1xf32, #tpu.memory_space<vmem>>, %arg4: memref<1x3x1024xi8, #tpu.memory_space<vmem>>, %arg5: memref<1x8x1024xf32, #tpu.memory_space<vmem>>, %arg6: memref<1x6x1024xf32, #tpu.memory_space<vmem>>, %arg7: memref<1x6x1024xbf16, #tpu.memory_space<vmem>>, %arg8: memref<1x6x1024xbf16, #tpu.memory_space<vmem>>) attributes {dimension_semantics = [#tpu.dimension_semantics<parallel>, #tpu.dimension_semantics<parallel>], iteration_bounds = array<i64: 2, 1>, scalar_prefetch = 0 : i64, scratch_operands = 0 : i64, tpu.core_type = #tpu.core_type<tc>, window_params = [{pipeline_mode = #tpu.pipeline_mode<synchronous>, transform_indices = @transform_0, window_bounds = array<i64: 8, 3>}, {pipeline_mode = #tpu.pipeline_mode<synchronous>, transform_indices = @transform_1, window_bounds = array<i64: 8, 1>}, {transform_indices = @transform_2, window_bounds = array<i64: 1, 3, 1024>}, {transform_indices = @transform_3, window_bounds = array<i64: 1, 8, 1024>}, {transform_indices = @transform_4, window_bounds = array<i64: 1, 6, 1024>}, {transform_indices = @transform_5, window_bounds = array<i64: 1, 6, 1024>}, {transform_indices = @transform_6, window_bounds = array<i64: 1, 6, 1024>}]} {
    %c0 = arith.constant 0 : index
    %c0_0 = arith.constant 0 : index
    %c0_1 = arith.constant 0 : index
    %0 = vector.load %arg4[%c0, %c0_0, %c0_1] : memref<1x3x1024xi8, #tpu.memory_space<vmem>>, vector<1x3x1024xi8>
    %1 = vector.shape_cast %0 : vector<1x3x1024xi8> to vector<3x1024xi8>
    %2 = arith.uitofp %1 : vector<3x1024xi8> to vector<3x1024xf32>
    %c0_2 = arith.constant 0 : index
    %c0_3 = arith.constant 0 : index
    %3 = vector.load %arg2[%c0_2, %c0_3] : memref<8x3xf32, #tpu.memory_space<vmem>>, vector<8x3xf32>
    %4 = vector.extract_strided_slice %3 {offsets = [0, 0], sizes = [8, 1], strides = [1, 1]} : vector<8x3xf32> to vector<8x1xf32>
    %5 = vector.extract_strided_slice %2 {offsets = [0, 0], sizes = [1, 1024], strides = [1, 1]} : vector<3x1024xf32> to vector<1x1024xf32>
    %6 = vector.broadcast %4 : vector<8x1xf32> to vector<8x1024xf32>
    %7 = vector.broadcast %5 : vector<1x1024xf32> to vector<8x1024xf32>
    %8 = arith.mulf %6, %7 : vector<8x1024xf32>
    %9 = vector.extract_strided_slice %3 {offsets = [0, 1], sizes = [8, 1], strides = [1, 1]} : vector<8x3xf32> to vector<8x1xf32>
    %10 = vector.extract_strided_slice %2 {offsets = [1, 0], sizes = [1, 1024], strides = [1, 1]} : vector<3x1024xf32> to vector<1x1024xf32>
    %11 = vector.broadcast %9 : vector<8x1xf32> to vector<8x1024xf32>
    %12 = vector.broadcast %10 : vector<1x1024xf32> to vector<8x1024xf32>
    %13 = arith.mulf %11, %12 : vector<8x1024xf32>
    %14 = arith.addf %8, %13 : vector<8x1024xf32>
    %15 = vector.extract_strided_slice %3 {offsets = [0, 2], sizes = [8, 1], strides = [1, 1]} : vector<8x3xf32> to vector<8x1xf32>
    %16 = vector.extract_strided_slice %2 {offsets = [2, 0], sizes = [1, 1024], strides = [1, 1]} : vector<3x1024xf32> to vector<1x1024xf32>
    %17 = vector.broadcast %15 : vector<8x1xf32> to vector<8x1024xf32>
    %18 = vector.broadcast %16 : vector<1x1024xf32> to vector<8x1024xf32>
    %19 = arith.mulf %17, %18 : vector<8x1024xf32>
    %20 = arith.addf %14, %19 : vector<8x1024xf32>
    %c0_4 = arith.constant 0 : index
    %c0_5 = arith.constant 0 : index
    %21 = vector.load %arg3[%c0_4, %c0_5] : memref<8x1xf32, #tpu.memory_space<vmem>>, vector<8x1xf32>
    %22 = vector.broadcast %21 : vector<8x1xf32> to vector<8x1024xf32>
    %23 = arith.addf %20, %22 : vector<8x1024xf32>
    %cst = arith.constant 5.000000e-01 : f32
    %24 = vector.broadcast %cst : f32 to vector<8x1024xf32>
    %25 = arith.mulf %24, %23 : vector<8x1024xf32>
    %26 = math.tanh %25 : vector<8x1024xf32>
    %cst_6 = arith.constant 5.000000e-01 : f32
    %27 = vector.broadcast %cst_6 : f32 to vector<8x1024xf32>
    %28 = arith.mulf %27, %26 : vector<8x1024xf32>
    %cst_7 = arith.constant 5.000000e-01 : f32
    %29 = vector.broadcast %cst_7 : f32 to vector<8x1024xf32>
    %30 = arith.addf %28, %29 : vector<8x1024xf32>
    %c0_8 = arith.constant 0 : index
    %c0_9 = arith.constant 0 : index
    %c0_10 = arith.constant 0 : index
    %31 = vector.load %arg5[%c0_8, %c0_9, %c0_10] : memref<1x8x1024xf32, #tpu.memory_space<vmem>>, vector<1x8x1024xf32>
    %32 = vector.shape_cast %31 : vector<1x8x1024xf32> to vector<8x1024xf32>
    %33 = vector.shape_cast %30 : vector<8x1024xf32> to vector<1x8x1024xf32>
    tpu.vector_store %arg5[%c0_8, %c0_9, %c0_10], %33 {strides = array<i32>} : memref<1x8x1024xf32, #tpu.memory_space<vmem>>, vector<1x8x1024xf32>,
    %34 = tpu.iota {dimensions = array<i32: 0>} : vector<8x1024xi32>
    %35 = vector.extract_strided_slice %30 {offsets = [2, 0], sizes = [6, 1024], strides = [1, 1]} : vector<8x1024xf32> to vector<6x1024xf32>
    %36 = vector.extract_strided_slice %30 {offsets = [0, 0], sizes = [2, 1024], strides = [1, 1]} : vector<8x1024xf32> to vector<2x1024xf32>
    %37 = tpu.concatenate %35, %36 in 0 : vector<6x1024xf32>, vector<2x1024xf32> -> vector<8x1024xf32>
    %38 = vector.extract_strided_slice %30 {offsets = [6, 0], sizes = [2, 1024], strides = [1, 1]} : vector<8x1024xf32> to vector<2x1024xf32>
    %39 = vector.extract_strided_slice %30 {offsets = [0, 0], sizes = [6, 1024], strides = [1, 1]} : vector<8x1024xf32> to vector<6x1024xf32>
    %40 = tpu.concatenate %38, %39 in 0 : vector<2x1024xf32>, vector<6x1024xf32> -> vector<8x1024xf32>
    %c2_i32 = arith.constant 2 : i32
    %41 = vector.broadcast %c2_i32 : i32 to vector<8x1024xi32>
    %42 = arith.cmpi slt, %34, %41 : vector<8x1024xi32>
    %43 = arith.addf %30, %37 : vector<8x1024xf32>
    %cst_11 = arith.constant 5.000000e-01 : f32
    %44 = vector.broadcast %cst_11 : f32 to vector<8x1024xf32>
    %45 = arith.mulf %44, %43 : vector<8x1024xf32>
    %c4_i32 = arith.constant 4 : i32
    %46 = vector.broadcast %c4_i32 : i32 to vector<8x1024xi32>
    %47 = arith.cmpi slt, %34, %46 : vector<8x1024xi32>
    %48 = arith.subf %30, %40 : vector<8x1024xf32>
    %49 = arith.select %47, %48, %30 : vector<8x1024xi1>, vector<8x1024xf32>
    %50 = arith.select %42, %45, %49 : vector<8x1024xi1>, vector<8x1024xf32>
    %c0_i32 = arith.constant 0 : i32
    %51 = vector.broadcast %c0_i32 : i32 to vector<8x1024xi32>
    %52 = arith.cmpi eq, %34, %51 : vector<8x1024xi32>
    %c2_i32_12 = arith.constant 2 : i32
    %53 = vector.broadcast %c2_i32_12 : i32 to vector<8x1024xi32>
    %54 = arith.cmpi eq, %34, %53 : vector<8x1024xi32>
    %55 = arith.ori %52, %54 : vector<8x1024xi1>
    %c1_i32 = arith.constant 1 : i32
    %56 = vector.broadcast %c1_i32 : i32 to vector<8x1024xi32>
    %57 = arith.cmpi eq, %34, %56 : vector<8x1024xi32>
    %c3_i32 = arith.constant 3 : i32
    %58 = vector.broadcast %c3_i32 : i32 to vector<8x1024xi32>
    %59 = arith.cmpi eq, %34, %58 : vector<8x1024xi32>
    %60 = arith.ori %57, %59 : vector<8x1024xi1>
    %cst_13 = arith.constant 3.125000e-02 : f32
    %cst_14 = arith.constant 1.000000e+00 : f32
    %61 = vector.broadcast %cst_13 : f32 to vector<8x1024xf32>
    %62 = vector.broadcast %cst_14 : f32 to vector<8x1024xf32>
    %63 = arith.select %60, %61, %62 : vector<8x1024xi1>, vector<8x1024xf32>
    %cst_15 = arith.constant 3.125000e-02 : f32
    %64 = vector.broadcast %cst_15 : f32 to vector<8x1024xf32>
    %65 = arith.select %55, %64, %63 : vector<8x1024xi1>, vector<8x1024xf32>
    %66 = vector.extract_strided_slice %50 {offsets = [0, 0], sizes = [6, 1024], strides = [1, 1]} : vector<8x1024xf32> to vector<6x1024xf32>
    %c0_16 = arith.constant 0 : index
    %c0_17 = arith.constant 0 : index
    %c0_18 = arith.constant 0 : index
    %67 = vector.load %arg6[%c0_16, %c0_17, %c0_18] : memref<1x6x1024xf32, #tpu.memory_space<vmem>>, vector<1x6x1024xf32>
    %68 = vector.shape_cast %67 : vector<1x6x1024xf32> to vector<6x1024xf32>
    %69 = vector.shape_cast %66 : vector<6x1024xf32> to vector<1x6x1024xf32>
    tpu.vector_store %arg6[%c0_16, %c0_17, %c0_18], %69 {strides = array<i32>} : memref<1x6x1024xf32, #tpu.memory_space<vmem>>, vector<1x6x1024xf32>,
    %70 = arith.mulf %30, %65 : vector<8x1024xf32>
    %71 = arith.truncf %70 : vector<8x1024xf32> to vector<8x1024xbf16>
    %72 = vector.extract_strided_slice %71 {offsets = [0, 0], sizes = [6, 1024], strides = [1, 1]} : vector<8x1024xbf16> to vector<6x1024xbf16>
    %c0_19 = arith.constant 0 : index
    %c0_20 = arith.constant 0 : index
    %c0_21 = arith.constant 0 : index
    %73 = vector.load %arg7[%c0_19, %c0_20, %c0_21] : memref<1x6x1024xbf16, #tpu.memory_space<vmem>>, vector<1x6x1024xbf16>
    %74 = vector.shape_cast %73 : vector<1x6x1024xbf16> to vector<6x1024xbf16>
    %75 = vector.shape_cast %72 : vector<6x1024xbf16> to vector<1x6x1024xbf16>
    tpu.vector_store %arg7[%c0_19, %c0_20, %c0_21], %75 {strides = array<i32>} : memref<1x6x1024xbf16, #tpu.memory_space<vmem>>, vector<1x6x1024xbf16>,
    %76 = arith.mulf %50, %65 : vector<8x1024xf32>
    %77 = arith.truncf %76 : vector<8x1024xf32> to vector<8x1024xbf16>
    %78 = vector.extract_strided_slice %77 {offsets = [0, 0], sizes = [6, 1024], strides = [1, 1]} : vector<8x1024xbf16> to vector<6x1024xbf16>
    %c0_22 = arith.constant 0 : index
    %c0_23 = arith.constant 0 : index
    %c0_24 = arith.constant 0 : index
    %79 = vector.load %arg8[%c0_22, %c0_23, %c0_24] : memref<1x6x1024xbf16, #tpu.memory_space<vmem>>, vector<1x6x1024xbf16>
    %80 = vector.shape_cast %79 : vector<1x6x1024xbf16> to vector<6x1024xbf16>
    %81 = vector.shape_cast %78 : vector<6x1024xbf16> to vector<1x6x1024xbf16>
    tpu.vector_store %arg8[%c0_22, %c0_23, %c0_24], %81 {strides = array<i32>} : memref<1x6x1024xbf16, #tpu.memory_space<vmem>>, vector<1x6x1024xbf16>,
    return
  }
  func.func @transform_0(%arg0: i32, %arg1: i32) -> (i32, i32) {
    %c0_i32 = arith.constant 0 : i32
    %c0_i32_0 = arith.constant 0 : i32
    %c0_i32_1 = arith.constant 0 : i32
    return %c0_i32, %c0_i32_0 : i32, i32
  }
  func.func @transform_1(%arg0: i32, %arg1: i32) -> (i32, i32) {
    %c0_i32 = arith.constant 0 : i32
    %c0_i32_0 = arith.constant 0 : i32
    %c0_i32_1 = arith.constant 0 : i32
    return %c0_i32, %c0_i32_0 : i32, i32
  }
  func.func @transform_2(%arg0: i32, %arg1: i32) -> (i32, i32, i32) {
    %c0_i32 = arith.constant 0 : i32
    %c0_i32_0 = arith.constant 0 : i32
    return %arg0, %c0_i32, %arg1 : i32, i32, i32
  }
  func.func @transform_3(%arg0: i32, %arg1: i32) -> (i32, i32, i32) {
    %c0_i32 = arith.constant 0 : i32
    %c0_i32_0 = arith.constant 0 : i32
    return %arg0, %c0_i32, %arg1 : i32, i32, i32
  }
  func.func @transform_4(%arg0: i32, %arg1: i32) -> (i32, i32, i32) {
    %c0_i32 = arith.constant 0 : i32
    %c0_i32_0 = arith.constant 0 : i32
    return %arg0, %c0_i32, %arg1 : i32, i32, i32
  }
  func.func @transform_5(%arg0: i32, %arg1: i32) -> (i32, i32, i32) {
    %c0_i32 = arith.constant 0 : i32
    %c0_i32_0 = arith.constant 0 : i32
    return %arg0, %c0_i32, %arg1 : i32, i32, i32
  }
  func.func @transform_6(%arg0: i32, %arg1: i32) -> (i32, i32, i32) {
    %c0_i32 = arith.constant 0 : i32
    %c0_i32_0 = arith.constant 0 : i32
    return %arg0, %c0_i32, %arg1 : i32, i32, i32
  }
}

</mosaic_0001>

<llo_original>
// kernel: tpu_custom_call.1
$region0: #{tpu_custom_call.1}
  #allocation0 [shape = 'u32[]', space=smem, size = 0x4, offset = 0x4, fixed_abs, tag = 'smem constant byte address 0x4 - core index']
  #allocation1 [shape = 'u32[144,128]{1,0:T(1,128)}', space=vmem, size = 0x12000, scoped, tag = 'internal scratch']
  %s0 = inlined_call_operand.vmem [shape: f32[8,3], index: 0, kind: input, shape index: {}]
  %s1 = inlined_call_operand.vmem [shape: f32[8,1], index: 1, kind: input, shape index: {}]
  %s2 = inlined_call_operand.vmem [shape: u8[2,3,1024], index: 2, kind: input, shape index: {}]
  %s3 = inlined_call_operand.hbm [shape: f32[2,8,1024], index: 3, kind: output, shape index: {0}]
  %s4 = inlined_call_operand.vmem [shape: f32[2,6,1024], index: 4, kind: output, shape index: {1}]
  %s5 = inlined_call_operand.vmem [shape: bf16[2,6,1024], index: 5, kind: output, shape index: {2}]
  %s6 = inlined_call_operand.vmem [shape: bf16[2,6,1024], index: 6, kind: output, shape index: {3}]
  %7 = xla_tuple %s3, %s4, %s5, %s6
  %s8 = sld [smem:[#allocation0]]
  $region69: #{tpu_custom_call.1} parent=0
    _
  %s10 = ssub.s32 1, %s8
  %s11 = scalar_select 0, %s10, %s8
  $region1: #{tpu_custom_call.1} parent=0
    #allocation2 [shape = 'u8[65536]{0}', space=vmem, size = 0x10000, scoped, tag = 'output window, operand 0']
    #allocation3 [shape = 's32[2]{0}', space=sflag, size = 0x8, scoped, tag = 'scoped memory for tpu_custom_call.1']
    %12 = vsyncpa [#allocation3], 0
    %s13 = scalar_lea.sflag [#allocation3], 1
    %14 = vsyncpa %s13, 0
    loop: start=0, step=1, limit=4
    $region2: #{tpu_custom_call.1} parent=1 // loop_pre_header
      _
    $region3: #{tpu_custom_call.1} parent=1 // loop_header
      %s16 = sphi 0, %s20
      %p17 = scmp.ge.s32.totalorder %s16, 4
      %s23 = sphi 0, %s35
      %s24 = sphi 0, %s31
      %s25 = sphi 0, %s23
      %s26 = sphi 0, %s24
      %s27 = sphi 0, %s25
      %s28 = sphi 0, %s26
      %s36 = sphi 0, %s36
      %s38 = sphi 0, %s36
      %s39 = sphi 0, %s38
      %s53 = sphi 0, %s39
      %s57 = sphi 0, %s57
      %s59 = sphi 0, %s57
      %s60 = sphi 0, %s59
      %s74 = sphi 0, %s60
      %s82 = sphi 0, %s84
      %s85 = sphi 0, %s82
      %s86 = sphi 0, %s85
      %s102 = sphi 0, %s86
      %s110 = sphi 0, %s112
      %s113 = sphi 0, %s110
      %s114 = sphi 0, %s113
      %s130 = sphi 0, %s114
      %s138 = sphi 0, %s140
      %s141 = sphi 0, %s138
      %s142 = sphi 0, %s141
      %s158 = sphi 0, %s142
      %s166 = sphi 0, %s168
      %s169 = sphi 0, %s166
      %s170 = sphi 0, %s169
      %s186 = sphi 0, %s170
      %s194 = sphi 0, %s196
      %s197 = sphi 0, %s194
      %s198 = sphi 0, %s197
      %s214 = sphi 0, %s198
    $region4: #{tpu_custom_call.1} parent=1 // loop_header_branch
      %19 = sbr.rel (%p17) target = $region8
    $region5: #{tpu_custom_call.1} parent=1 // loop_body
      %s21 = ssub.s32 %s16, 1
      %s22 = ssub.s32 %s16, 2
      %s29 = sadd.s32 1, %s24
      %p30 = scmp.ge.s32.totalorder %s29, 1
      %s31 = scalar_select %p30, 0, %s29
      %s32 = sadd.s32 1, %s23
      %s33 = scalar_select %p30, %s32, %s23
      %p34 = scmp.ge.s32.totalorder %s33, 2
      %s35 = scalar_select %p34, 0, %s33
      %s37 = sadd.s32 %s36, 1
      %p40 = scmp.eq.s32.totalorder %s16, 1
      %p41 = scmp.ne.s32.totalorder %s36, %s38
      %p42 = scmp.eq.s32.totalorder %s16, 0
      %p43 = por %p41, %p42
      %p44 = scmp.ne.s32.totalorder %s36, %s38
      %p45 = scmp.eq.s32.totalorder %s21, 1
      %p46 = por %p44, %p45
      %p47 = scmp.ne.s32.totalorder %s38, %s39
      %p48 = scmp.eq.s32.totalorder %s21, 0
      %p49 = por %p47, %p48
      %p50 = scmp.ne.s32.totalorder %s38, %s39
      %p51 = scmp.eq.s32.totalorder %s22, 1
      %p52 = por %p50, %p51
      %p54 = scmp.ne.s32.totalorder %s39, %s53
      %p55 = scmp.eq.s32.totalorder %s22, 0
      %p56 = por %p54, %p55
      %s58 = sadd.s32 %s57, 1
      %p61 = scmp.eq.s32.totalorder %s16, 1
      %p62 = scmp.ne.s32.totalorder %s57, %s59
      %p63 = scmp.eq.s32.totalorder %s16, 0
      %p64 = por %p62, %p63
      %p65 = scmp.ne.s32.totalorder %s57, %s59
      %p66 = scmp.eq.s32.totalorder %s21, 1
      %p67 = por %p65, %p66
      %p68 = scmp.ne.s32.totalorder %s59, %s60
      %p69 = scmp.eq.s32.totalorder %s21, 0
      %p70 = por %p68, %p69
      %p71 = scmp.ne.s32.totalorder %s59, %s60
      %p72 = scmp.eq.s32.totalorder %s22, 1
      %p73 = por %p71, %p72
      %p75 = scmp.ne.s32.totalorder %s60, %s74
      %p76 = scmp.eq.s32.totalorder %s22, 0
      %p77 = por %p75, %p76
      %s78 = ssub.s32 %s23, %s35
      %s79 = ssub.s32 %s24, %s31
      %s80 = sor.u32 %s78, %s79
      %p81 = scmp.eq.s32.totalorder %s80, 0
      %s83 = sadd.s32 %s82, 1
      %s84 = scalar_select %p81, %s82, %s83
      %p87 = pneg %p81
      %p88 = scmp.eq.s32.totalorder %s16, 1
      %p89 = por %p87, %p88
      %p90 = scmp.ne.s32.totalorder %s82, %s85
      %p91 = scmp.eq.s32.totalorder %s16, 0
      %p92 = por %p90, %p91
      %p93 = scmp.ne.s32.totalorder %s82, %s85
      %p94 = scmp.eq.s32.totalorder %s21, 1
      %p95 = por %p93, %p94
      %p96 = scmp.ne.s32.totalorder %s85, %s86
      %p97 = scmp.eq.s32.totalorder %s21, 0
      %p98 = por %p96, %p97
      %p99 = scmp.ne.s32.totalorder %s85, %s86
      %p100 = scmp.eq.s32.totalorder %s22, 1
      %p101 = por %p99, %p100
      %p103 = scmp.ne.s32.totalorder %s86, %s102
      %p104 = scmp.eq.s32.totalorder %s22, 0
      %p105 = por %p103, %p104
      %s106 = ssub.s32 %s23, %s35
      %s107 = ssub.s32 %s24, %s31
      %s108 = sor.u32 %s106, %s107
      %p109 = scmp.eq.s32.totalorder %s108, 0
      %s111 = sadd.s32 %s110, 1
      %s112 = scalar_select %p109, %s110, %s111
      %p115 = pneg %p109
      %p116 = scmp.eq.s32.totalorder %s16, 1
      %p117 = por %p115, %p116
      %p118 = scmp.ne.s32.totalorder %s110, %s113
      %p119 = scmp.eq.s32.totalorder %s16, 0
      %p120 = por %p118, %p119
      %p121 = scmp.ne.s32.totalorder %s110, %s113
      %p122 = scmp.eq.s32.totalorder %s21, 1
      %p123 = por %p121, %p122
      %p124 = scmp.ne.s32.totalorder %s113, %s114
      %p125 = scmp.eq.s32.totalorder %s21, 0
      %p126 = por %p124, %p125
      %p127 = scmp.ne.s32.totalorder %s113, %s114
      %p128 = scmp.eq.s32.totalorder %s22, 1
      %p129 = por %p127, %p128
      %p131 = scmp.ne.s32.totalorder %s114, %s130
      %p132 = scmp.eq.s32.totalorder %s22, 0
      %p133 = por %p131, %p132
      %s134 = ssub.s32 %s23, %s35
      %s135 = ssub.s32 %s24, %s31
      %s136 = sor.u32 %s134, %s135
      %p137 = scmp.eq.s32.totalorder %s136, 0
      %s139 = sadd.s32 %s138, 1
      %s140 = scalar_select %p137, %s138, %s139
      %p143 = pneg %p137
      %p144 = scmp.eq.s32.totalorder %s16, 1
      %p145 = por %p143, %p144
      %p146 = scmp.ne.s32.totalorder %s138, %s141
      %p147 = scmp.eq.s32.totalorder %s16, 0
      %p148 = por %p146, %p147
      %p149 = scmp.ne.s32.totalorder %s138, %s141
      %p150 = scmp.eq.s32.totalorder %s21, 1
      %p151 = por %p149, %p150
      %p152 = scmp.ne.s32.totalorder %s141, %s142
      %p153 = scmp.eq.s32.totalorder %s21, 0
      %p154 = por %p152, %p153
      %p155 = scmp.ne.s32.totalorder %s141, %s142
      %p156 = scmp.eq.s32.totalorder %s22, 1
      %p157 = por %p155, %p156
      %p159 = scmp.ne.s32.totalorder %s142, %s158
      %p160 = scmp.eq.s32.totalorder %s22, 0
      %p161 = por %p159, %p160
      %s162 = ssub.s32 %s23, %s35
      %s163 = ssub.s32 %s24, %s31
      %s164 = sor.u32 %s162, %s163
      %p165 = scmp.eq.s32.totalorder %s164, 0
      %s167 = sadd.s32 %s166, 1
      %s168 = scalar_select %p165, %s166, %s167
      %p171 = pneg %p165
      %p172 = scmp.eq.s32.totalorder %s16, 1
      %p173 = por %p171, %p172
      %p174 = scmp.ne.s32.totalorder %s166, %s169
      %p175 = scmp.eq.s32.totalorder %s16, 0
      %p176 = por %p174, %p175
      %p177 = scmp.ne.s32.totalorder %s166, %s169
      %p178 = scmp.eq.s32.totalorder %s21, 1
      %p179 = por %p177, %p178
      %p180 = scmp.ne.s32.totalorder %s169, %s170
      %p181 = scmp.eq.s32.totalorder %s21, 0
      %p182 = por %p180, %p181
      %p183 = scmp.ne.s32.totalorder %s169, %s170
      %p184 = scmp.eq.s32.totalorder %s22, 1
      %p185 = por %p183, %p184
      %p187 = scmp.ne.s32.totalorder %s170, %s186
      %p188 = scmp.eq.s32.totalorder %s22, 0
      %p189 = por %p187, %p188
      %s190 = ssub.s32 %s23, %s35
      %s191 = ssub.s32 %s24, %s31
      %s192 = sor.u32 %s190, %s191
      %p193 = scmp.eq.s32.totalorder %s192, 0
      %s195 = sadd.s32 %s194, 1
      %s196 = scalar_select %p193, %s194, %s195
      %p199 = pneg %p193
      %p200 = scmp.eq.s32.totalorder %s16, 1
      %p201 = por %p199, %p200
      %p202 = scmp.ne.s32.totalorder %s194, %s197
      %p203 = scmp.eq.s32.totalorder %s16, 0
      %p204 = por %p202, %p203
      %p205 = scmp.ne.s32.totalorder %s194, %s197
      %p206 = scmp.eq.s32.totalorder %s21, 1
      %p207 = por %p205, %p206
      %p208 = scmp.ne.s32.totalorder %s197, %s198
      %p209 = scmp.eq.s32.totalorder %s21, 0
      %p210 = por %p208, %p209
      %p211 = scmp.ne.s32.totalorder %s197, %s198
      %p212 = scmp.eq.s32.totalorder %s22, 1
      %p213 = por %p211, %p212
      %p215 = scmp.ne.s32.totalorder %s198, %s214
      %p216 = scmp.eq.s32.totalorder %s22, 0
      %p217 = por %p215, %p216
      %p218 = scmp.le.s32.totalorder 1, %s16
      %p219 = scmp.lt.s32.totalorder %s16, 3
      %p220 = pnand %p218, %p219
      %p221 = pneg %p220
      // Predicated region
      $region9: #{tpu_custom_call.1} parent=5 // pred_check
        _
      $region10: #{tpu_custom_call.1} parent=5 // pred_check_branch
        %223 = sbr.rel (%p220) target = $region12
      $region11: #{tpu_custom_call.1} parent=5 // pred_region
        %s224 = ssub.s32 %s16, 1
        // Predicated region
        $region13: #{tpu_custom_call.1} parent=11 // pred_check
          %p225 = pneg %p49
        $region14: #{tpu_custom_call.1} parent=11 // pred_check_branch
          %227 = sbr.rel (%p225) target = $region16
        $region15: #{tpu_custom_call.1} parent=11 // pred_region
          _
        $region16: #{tpu_custom_call.1} parent=11 // pred_fallthru
          _
        // Predicated region
        $region17: #{tpu_custom_call.1} parent=11 // pred_check
          %p228 = pneg %p70
        $region18: #{tpu_custom_call.1} parent=11 // pred_check_branch
          %230 = sbr.rel (%p228) target = $region20
        $region19: #{tpu_custom_call.1} parent=11 // pred_region
          _
        $region20: #{tpu_custom_call.1} parent=11 // pred_fallthru
          _
      $region12: #{tpu_custom_call.1} parent=5 // pred_fallthru
        _
      %p231 = scmp.lt.s32.totalorder %s16, 2
      // Predicated region
      $region21: #{tpu_custom_call.1} parent=5 // pred_check
        %p232 = pneg %p231
      $region22: #{tpu_custom_call.1} parent=5 // pred_check_branch
        %234 = sbr.rel (%p232) target = $region24
      $region23: #{tpu_custom_call.1} parent=5 // pred_region
        // Predicated region
        $region25: #{tpu_custom_call.1} parent=23 // pred_check
          %p235 = pneg %p92
        $region26: #{tpu_custom_call.1} parent=23 // pred_check_branch
          %237 = sbr.rel (%p235) target = $region28
        $region27: #{tpu_custom_call.1} parent=23 // pred_region
          %s238 = smul.u32 8, %s24
          %p239 = scmp.lt.s32.totalorder %s23, 1
          %s240 = scalar_select %p239, %s23, 1
          %p241 = scmp.lt.s32.totalorder %s238, 7
          %s242 = scalar_select %p241, %s238, 7
          %s243 = smul.addr %s240, 8
          %s244 = sadd.s32 %s242, %s243
          %s245 = scalar_lea.vmem %s2, %s244
          %s246 = smul.u32 8, %s24
        $region28: #{tpu_custom_call.1} parent=23 // pred_fallthru
          _
      $region24: #{tpu_custom_call.1} parent=5 // pred_fallthru
        _
      %p247 = scmp.le.s32.totalorder 1, %s16
      %p248 = scmp.lt.s32.totalorder %s16, 3
      %p249 = pnand %p247, %p248
      %p250 = pneg %p249
      // Predicated region
      $region29: #{tpu_custom_call.1} parent=5 // pred_check
        _
      $region30: #{tpu_custom_call.1} parent=5 // pred_check_branch
        %252 = sbr.rel (%p249) target = $region32
      $region31: #{tpu_custom_call.1} parent=5 // pred_region
        %s253 = ssub.s32 %s16, 1
        %p254 = pneg %p49
        %p255 = pneg %p46
        %p256 = pneg %p70
        %p257 = pneg %p67
        %s258 = smul.u32 8, %s26
        %p259 = scmp.lt.s32.totalorder %s25, 1
        %s260 = scalar_select %p259, %s25, 1
        %p261 = scmp.lt.s32.totalorder %s258, 7
        %s262 = scalar_select %p261, %s258, 7
        %s263 = smul.addr %s260, 8
        %s264 = sadd.s32 %s262, %s263
        %s265 = scalar_lea.vmem %s2, %s264
        %p266 = pneg %p98
        %p267 = pneg %p95
        %p268 = pneg %p126
        %p269 = pneg %p123
        %s270 = sand.u32 %s113, 1
        %s271 = scalar_lea.sflag [#allocation3], %s270
        %s272 = sand.u32 %s113, 1
        %s273 = smul.addr %s272, 64
        %s274 = scalar_lea.vmem [#allocation2], %s273
        %p275 = pneg %p154
        %p276 = pneg %p151
        %s277 = smul.u32 8, %s26
        %p278 = scmp.lt.s32.totalorder %s25, 1
        %s279 = scalar_select %p278, %s25, 1
        %p280 = scmp.lt.s32.totalorder %s277, 7
        %s281 = scalar_select %p280, %s277, 7
        %s282 = smul.addr %s279, 8
        %s283 = sadd.s32 %s281, %s282
        %s284 = smul.addr %s283, 8
        %s285 = scalar_lea.vmem %s4, %s284
        %p286 = pneg %p182
        %p287 = pneg %p179
        %s288 = smul.u32 8, %s26
        %p289 = scmp.lt.s32.totalorder %s25, 1
        %s290 = scalar_select %p289, %s25, 1
        %p291 = scmp.lt.s32.totalorder %s288, 7
        %s292 = scalar_select %p291, %s288, 7
        %s293 = smul.addr %s290, 8
        %s294 = sadd.s32 %s292, %s293
        %s295 = smul.addr %s294, 4
        %s296 = scalar_lea.vmem %s5, %s295
        %p297 = pneg %p210
        %p298 = pneg %p207
        %s299 = smul.u32 8, %s26
        %p300 = scmp.lt.s32.totalorder %s25, 1
        %s301 = scalar_select %p300, %s25, 1
        %p302 = scmp.lt.s32.totalorder %s299, 7
        %s303 = scalar_select %p302, %s299, 7
        %s304 = smul.addr %s301, 8
        %s305 = sadd.s32 %s303, %s304
        %s306 = smul.addr %s305, 4
        %s307 = scalar_lea.vmem %s6, %s306
        %s308 = smul.u32 8, %s26
        %p309 = scmp.lt.s32.totalorder %s25, 1
        %s310 = scalar_select %p309, %s25, 1
        %p311 = scmp.lt.s32.totalorder %s308, 7
        %s312 = scalar_select %p311, %s308, 7
        %s313 = smul.addr %s310, 8
        %s314 = sadd.s32 %s312, %s313
        %s315 = scalar_lea.vmem %s2, %s314
        %s316 = smul.u32 8, %s26
        %s317 = smul.u32 8, %s26
        %s318 = smul.u32 8, %s26
        %p319 = scmp.lt.s32.totalorder %s25, 1
        %s320 = scalar_select %p319, %s25, 1
        %p321 = scmp.lt.s32.totalorder %s318, 7
        %s322 = scalar_select %p321, %s318, 7
        %s323 = smul.addr %s320, 8
        %s324 = sadd.s32 %s322, %s323
        %s325 = smul.addr %s324, 8
        %s326 = scalar_lea.vmem %s4, %s325
        %s327 = smul.u32 8, %s26
        %s328 = smul.u32 8, %s26
        %p329 = scmp.lt.s32.totalorder %s25, 1
        %s330 = scalar_select %p329, %s25, 1
        %p331 = scmp.lt.s32.totalorder %s328, 7
        %s332 = scalar_select %p331, %s328, 7
        %s333 = smul.addr %s330, 8
        %s334 = sadd.s32 %s332, %s333
        %s335 = smul.addr %s334, 4
        %s336 = scalar_lea.vmem %s5, %s335
        %s337 = smul.u32 8, %s26
        %s338 = smul.u32 8, %s26
        %p339 = scmp.lt.s32.totalorder %s25, 1
        %s340 = scalar_select %p339, %s25, 1
        %p341 = scmp.lt.s32.totalorder %s338, 7
        %s342 = scalar_select %p341, %s338, 7
        %s343 = smul.addr %s340, 8
        %s344 = sadd.s32 %s342, %s343
        %s345 = smul.addr %s344, 4
        %s346 = scalar_lea.vmem %s6, %s345
        %s347 = smul.u32 8, %s26
        %v348 = vld [vmem:[%s315] sm:$0xff]
        %v349 = vunpack.c.0.s8 %v348
        %v350 = vunpack.c.1.s8 %v348
        %v351 = vunpack.c.2.s8 %v348
        %v352 = vunpack.c.3.s8 %v348
        %v353 = vand.u32 %v349, 255
        %v354 = vand.u32 %v350, 255
        %v355 = vand.u32 %v351, 255
        %v356 = vand.u32 %v352, 255
        %v357 = vcvt.s32.f32 %v353
        %v358 = vcvt.s32.f32 %v354
        %v359 = vcvt.s32.f32 %v355
        %v360 = vcvt.s32.f32 %v356
        %v361 = vld [vmem:[%s0] sm:$0xff]
        %363 = vset.pattern.permute.xlu0 0
        %364 = vperm.xlu0 %363, %v361
        %v365 = vpop.permute.xlu0 %364
        %v371 = vlaneseq
        %v372 = vshrl.u32 %v371, 7
        %v373 = vsub.s32 0, %v372
        %v374 = vrot.slane %v357, %v373
        %v375 = vlaneseq
        %v376 = vshrl.u32 %v375, 7
        %v377 = vsub.s32 4, %v376
        %v378 = vrot.slane %v357, %v377
        %v379 = vlaneseq
        %v380 = vshrl.u32 %v379, 7
        %v381 = vsub.s32 0, %v380
        %v382 = vrot.slane %v358, %v381
        %v383 = vlaneseq
        %v384 = vshrl.u32 %v383, 7
        %v385 = vsub.s32 4, %v384
        %v386 = vrot.slane %v358, %v385
        %v387 = vlaneseq
        %v388 = vshrl.u32 %v387, 7
        %v389 = vsub.s32 0, %v388
        %v390 = vrot.slane %v359, %v389
        %v391 = vlaneseq
        %v392 = vshrl.u32 %v391, 7
        %v393 = vsub.s32 4, %v392
        %v394 = vrot.slane %v359, %v393
        %v395 = vlaneseq
        %v396 = vshrl.u32 %v395, 7
        %v397 = vsub.s32 0, %v396
        %v398 = vrot.slane %v360, %v397
        %v399 = vlaneseq
        %v400 = vshrl.u32 %v399, 7
        %v401 = vsub.s32 4, %v400
        %v402 = vrot.slane %v360, %v401
        %v411 = vlaneseq
        %v412 = vshrl.u32 %v411, 7
        %v413 = vsub.s32 0, %v412
        %v414 = vrot.slane %v374, %v413
        %v415 = vlaneseq
        %v416 = vshrl.u32 %v415, 7
        %v417 = vsub.s32 0, %v416
        %v418 = vrot.slane %v378, %v417
        %v419 = vlaneseq
        %v420 = vshrl.u32 %v419, 7
        %v421 = vsub.s32 0, %v420
        %v422 = vrot.slane %v382, %v421
        %v423 = vlaneseq
        %v424 = vshrl.u32 %v423, 7
        %v425 = vsub.s32 0, %v424
        %v426 = vrot.slane %v386, %v425
        %v427 = vlaneseq
        %v428 = vshrl.u32 %v427, 7
        %v429 = vsub.s32 0, %v428
        %v430 = vrot.slane %v390, %v429
        %v431 = vlaneseq
        %v432 = vshrl.u32 %v431, 7
        %v433 = vsub.s32 0, %v432
        %v434 = vrot.slane %v394, %v433
        %v435 = vlaneseq
        %v436 = vshrl.u32 %v435, 7
        %v437 = vsub.s32 0, %v436
        %v438 = vrot.slane %v398, %v437
        %v439 = vlaneseq
        %v440 = vshrl.u32 %v439, 7
        %v441 = vsub.s32 0, %v440
        %v442 = vrot.slane %v402, %v441
        %v443 = vmul.f32 %v365, %v414
        %v444 = vmul.f32 %v365, %v418
        %v445 = vmul.f32 %v365, %v422
        %v446 = vmul.f32 %v365, %v426
        %v447 = vmul.f32 %v365, %v430
        %v448 = vmul.f32 %v365, %v434
        %v449 = vmul.f32 %v365, %v438
        %v450 = vmul.f32 %v365, %v442
        %451 = vset.pattern.permute.xlu0 1
        %452 = vperm.xlu0 %451, %v361
        %v453 = vpop.permute.xlu0 %452
        %v455 = vlaneseq
        %v456 = vshrl.u32 %v455, 7
        %v457 = vsub.s32 1, %v456
        %v458 = vrot.slane %v357, %v457
        %v459 = vlaneseq
        %v460 = vshrl.u32 %v459, 7
        %v461 = vsub.s32 5, %v460
        %v462 = vrot.slane %v357, %v461
        %v463 = vlaneseq
        %v464 = vshrl.u32 %v463, 7
        %v465 = vsub.s32 1, %v464
        %v466 = vrot.slane %v358, %v465
        %v467 = vlaneseq
        %v468 = vshrl.u32 %v467, 7
        %v469 = vsub.s32 5, %v468
        %v470 = vrot.slane %v358, %v469
        %v471 = vlaneseq
        %v472 = vshrl.u32 %v471, 7
        %v473 = vsub.s32 1, %v472
        %v474 = vrot.slane %v359, %v473
        %v475 = vlaneseq
        %v476 = vshrl.u32 %v475, 7
        %v477 = vsub.s32 5, %v476
        %v478 = vrot.slane %v359, %v477
        %v479 = vlaneseq
        %v480 = vshrl.u32 %v479, 7
        %v481 = vsub.s32 1, %v480
        %v482 = vrot.slane %v360, %v481
        %v483 = vlaneseq
        %v484 = vshrl.u32 %v483, 7
        %v485 = vsub.s32 5, %v484
        %v486 = vrot.slane %v360, %v485
        %v495 = vlaneseq
        %v496 = vshrl.u32 %v495, 7
        %v497 = vsub.s32 1, %v496
        %v498 = vrot.slane %v458, %v497
        %v499 = vlaneseq
        %v500 = vshrl.u32 %v499, 7
        %v501 = vsub.s32 1, %v500
        %v502 = vrot.slane %v462, %v501
        %v503 = vlaneseq
        %v504 = vshrl.u32 %v503, 7
        %v505 = vsub.s32 1, %v504
        %v506 = vrot.slane %v466, %v505
        %v507 = vlaneseq
        %v508 = vshrl.u32 %v507, 7
        %v509 = vsub.s32 1, %v508
        %v510 = vrot.slane %v470, %v509
        %v511 = vlaneseq
        %v512 = vshrl.u32 %v511, 7
        %v513 = vsub.s32 1, %v512
        %v514 = vrot.slane %v474, %v513
        %v515 = vlaneseq
        %v516 = vshrl.u32 %v515, 7
        %v517 = vsub.s32 1, %v516
        %v518 = vrot.slane %v478, %v517
        %v519 = vlaneseq
        %v520 = vshrl.u32 %v519, 7
        %v521 = vsub.s32 1, %v520
        %v522 = vrot.slane %v482, %v521
        %v523 = vlaneseq
        %v524 = vshrl.u32 %v523, 7
        %v525 = vsub.s32 1, %v524
        %v526 = vrot.slane %v486, %v525
        %v527 = vmul.f32 %v453, %v498
        %v528 = vmul.f32 %v453, %v502
        %v529 = vmul.f32 %v453, %v506
        %v530 = vmul.f32 %v453, %v510
        %v531 = vmul.f32 %v453, %v514
        %v532 = vmul.f32 %v453, %v518
        %v533 = vmul.f32 %v453, %v522
        %v534 = vmul.f32 %v453, %v526
        %v535 = vadd.f32 %v443, %v527
        %v536 = vadd.f32 %v444, %v528
        %v537 = vadd.f32 %v445, %v529
        %v538 = vadd.f32 %v446, %v530
        %v539 = vadd.f32 %v447, %v531
        %v540 = vadd.f32 %v448, %v532
        %v541 = vadd.f32 %v449, %v533
        %v542 = vadd.f32 %v450, %v534
        %543 = vset.pattern.permute.xlu0 2
        %544 = vperm.xlu0 %543, %v361
        %v545 = vpop.permute.xlu0 %544
        %v547 = vlaneseq
        %v548 = vshrl.u32 %v547, 7
        %v549 = vsub.s32 2, %v548
        %v550 = vrot.slane %v357, %v549
        %v551 = vlaneseq
        %v552 = vshrl.u32 %v551, 7
        %v553 = vsub.s32 6, %v552
        %v554 = vrot.slane %v357, %v553
        %v555 = vlaneseq
        %v556 = vshrl.u32 %v555, 7
        %v557 = vsub.s32 2, %v556
        %v558 = vrot.slane %v358, %v557
        %v559 = vlaneseq
        %v560 = vshrl.u32 %v559, 7
        %v561 = vsub.s32 6, %v560
        %v562 = vrot.slane %v358, %v561
        %v563 = vlaneseq
        %v564 = vshrl.u32 %v563, 7
        %v565 = vsub.s32 2, %v564
        %v566 = vrot.slane %v359, %v565
        %v567 = vlaneseq
        %v568 = vshrl.u32 %v567, 7
        %v569 = vsub.s32 6, %v568
        %v570 = vrot.slane %v359, %v569
        %v571 = vlaneseq
        %v572 = vshrl.u32 %v571, 7
        %v573 = vsub.s32 2, %v572
        %v574 = vrot.slane %v360, %v573
        %v575 = vlaneseq
        %v576 = vshrl.u32 %v575, 7
        %v577 = vsub.s32 6, %v576
        %v578 = vrot.slane %v360, %v577
        %v587 = vlaneseq
        %v588 = vshrl.u32 %v587, 7
        %v589 = vsub.s32 2, %v588
        %v590 = vrot.slane %v550, %v589
        %v591 = vlaneseq
        %v592 = vshrl.u32 %v591, 7
        %v593 = vsub.s32 2, %v592
        %v594 = vrot.slane %v554, %v593
        %v595 = vlaneseq
        %v596 = vshrl.u32 %v595, 7
        %v597 = vsub.s32 2, %v596
        %v598 = vrot.slane %v558, %v597
        %v599 = vlaneseq
        %v600 = vshrl.u32 %v599, 7
        %v601 = vsub.s32 2, %v600
        %v602 = vrot.slane %v562, %v601
        %v603 = vlaneseq
        %v604 = vshrl.u32 %v603, 7
        %v605 = vsub.s32 2, %v604
        %v606 = vrot.slane %v566, %v605
        %v607 = vlaneseq
        %v608 = vshrl.u32 %v607, 7
        %v609 = vsub.s32 2, %v608
        %v610 = vrot.slane %v570, %v609
        %v611 = vlaneseq
        %v612 = vshrl.u32 %v611, 7
        %v613 = vsub.s32 2, %v612
        %v614 = vrot.slane %v574, %v613
        %v615 = vlaneseq
        %v616 = vshrl.u32 %v615, 7
        %v617 = vsub.s32 2, %v616
        %v618 = vrot.slane %v578, %v617
        %v619 = vmul.f32 %v545, %v590
        %v620 = vmul.f32 %v545, %v594
        %v621 = vmul.f32 %v545, %v598
        %v622 = vmul.f32 %v545, %v602
        %v623 = vmul.f32 %v545, %v606
        %v624 = vmul.f32 %v545, %v610
        %v625 = vmul.f32 %v545, %v614
        %v626 = vmul.f32 %v545, %v618
        %v627 = vadd.f32 %v535, %v619
        %v628 = vadd.f32 %v536, %v620
        %v629 = vadd.f32 %v537, %v621
        %v630 = vadd.f32 %v538, %v622
        %v631 = vadd.f32 %v539, %v623
        %v632 = vadd.f32 %v540, %v624
        %v633 = vadd.f32 %v541, %v625
        %v634 = vadd.f32 %v542, %v626
        %v635 = vld [vmem:[%s1] sm:$0xff]
        %637 = vset.pattern.permute.xlu0 0
        %638 = vperm.xlu0 %637, %v635
        %v639 = vpop.permute.xlu0 %638
        %v641 = vadd.f32 %v627, %v639
        %v642 = vadd.f32 %v628, %v639
        %v643 = vadd.f32 %v629, %v639
        %v644 = vadd.f32 %v630, %v639
        %v645 = vadd.f32 %v631, %v639
        %v646 = vadd.f32 %v632, %v639
        %v647 = vadd.f32 %v633, %v639
        %v648 = vadd.f32 %v634, %v639
        %v649 = vmul.f32 %v641, 0.5
        %v650 = vmul.f32 %v642, 0.5
        %v651 = vmul.f32 %v643, 0.5
        %v652 = vmul.f32 %v644, 0.5
        %v653 = vmul.f32 %v645, 0.5
        %v654 = vmul.f32 %v646, 0.5
        %v655 = vmul.f32 %v647, 0.5
        %v656 = vmul.f32 %v648, 0.5
        %v657 = vtanh.pop %v649
        %v658 = vtanh.pop %v650
        %v659 = vtanh.pop %v651
        %v660 = vtanh.pop %v652
        %v661 = vtanh.pop %v653
        %v662 = vtanh.pop %v654
        %v663 = vtanh.pop %v655
        %v664 = vtanh.pop %v656
        %v665 = vmul.f32 %v657, 0.5
        %v666 = vmul.f32 %v658, 0.5
        %v667 = vmul.f32 %v659, 0.5
        %v668 = vmul.f32 %v660, 0.5
        %v669 = vmul.f32 %v661, 0.5
        %v670 = vmul.f32 %v662, 0.5
        %v671 = vmul.f32 %v663, 0.5
        %v672 = vmul.f32 %v664, 0.5
        %v673 = vadd.f32 %v665, 0.5
        %v674 = vadd.f32 %v666, 0.5
        %v675 = vadd.f32 %v667, 0.5
        %v676 = vadd.f32 %v668, 0.5
        %v677 = vadd.f32 %v669, 0.5
        %v678 = vadd.f32 %v670, 0.5
        %v679 = vadd.f32 %v671, 0.5
        %v680 = vadd.f32 %v672, 0.5
        %681 = vst [vmem:[%s274] sm:$0xff] %v673
        %682 = vst [vmem:[%s274 + $0x8] sm:$0xff] %v674
        %683 = vst [vmem:[%s274 + $0x10] sm:$0xff] %v675
        %684 = vst [vmem:[%s274 + $0x18] sm:$0xff] %v676
        %685 = vst [vmem:[%s274 + $0x20] sm:$0xff] %v677
        %686 = vst [vmem:[%s274 + $0x28] sm:$0xff] %v678
        %687 = vst [vmem:[%s274 + $0x30] sm:$0xff] %v679
        %688 = vst [vmem:[%s274 + $0x38] sm:$0xff] %v680
        %v689 = vlaneseq
        %v690 = vshrl.u32 %v689, 7
        %v699 = vrot.slane %v673, 2
        %v700 = vrot.slane %v674, 2
        %v701 = vrot.slane %v675, 2
        %v702 = vrot.slane %v676, 2
        %v703 = vrot.slane %v677, 2
        %v704 = vrot.slane %v678, 2
        %v705 = vrot.slane %v679, 2
        %v706 = vrot.slane %v680, 2
        %vm715 = vcmask 1045504
        %v716 = vsel %vm715, %v699, %v699
        %v717 = vsel %vm715, %v700, %v700
        %v718 = vsel %vm715, %v701, %v701
        %v719 = vsel %vm715, %v702, %v702
        %v720 = vsel %vm715, %v703, %v703
        %v721 = vsel %vm715, %v704, %v704
        %v722 = vsel %vm715, %v705, %v705
        %v723 = vsel %vm715, %v706, %v706
        %v724 = vrot.slane %v673, 6
        %v725 = vrot.slane %v674, 6
        %v726 = vrot.slane %v675, 6
        %v727 = vrot.slane %v676, 6
        %v728 = vrot.slane %v677, 6
        %v729 = vrot.slane %v678, 6
        %v730 = vrot.slane %v679, 6
        %v731 = vrot.slane %v680, 6
        %vm740 = vcmask 1041408
        %v741 = vsel %vm740, %v724, %v724
        %v742 = vsel %vm740, %v725, %v725
        %v743 = vsel %vm740, %v726, %v726
        %v744 = vsel %vm740, %v727, %v727
        %v745 = vsel %vm740, %v728, %v728
        %v746 = vsel %vm740, %v729, %v729
        %v747 = vsel %vm740, %v730, %v730
        %v748 = vsel %vm740, %v731, %v731
        %vm749 = vcmp.lt.s32.totalorder %v690, 2
        %v750 = vadd.f32 %v673, %v716
        %v751 = vadd.f32 %v674, %v717
        %v752 = vadd.f32 %v675, %v718
        %v753 = vadd.f32 %v676, %v719
        %v754 = vadd.f32 %v677, %v720
        %v755 = vadd.f32 %v678, %v721
        %v756 = vadd.f32 %v679, %v722
        %v757 = vadd.f32 %v680, %v723
        %v758 = vmul.f32 %v750, 0.5
        %v759 = vmul.f32 %v751, 0.5
        %v760 = vmul.f32 %v752, 0.5
        %v761 = vmul.f32 %v753, 0.5
        %v762 = vmul.f32 %v754, 0.5
        %v763 = vmul.f32 %v755, 0.5
        %v764 = vmul.f32 %v756, 0.5
        %v765 = vmul.f32 %v757, 0.5
        %vm766 = vcmp.lt.s32.totalorder %v690, 4
        %v767 = vsub.f32 %v673, %v741
        %v768 = vsub.f32 %v674, %v742
        %v769 = vsub.f32 %v675, %v743
        %v770 = vsub.f32 %v676, %v744
        %v771 = vsub.f32 %v677, %v745
        %v772 = vsub.f32 %v678, %v746
        %v773 = vsub.f32 %v679, %v747
        %v774 = vsub.f32 %v680, %v748
        %v775 = vsel %vm766, %v767, %v673
        %v776 = vsel %vm766, %v768, %v674
        %v777 = vsel %vm766, %v769, %v675
        %v778 = vsel %vm766, %v770, %v676
        %v779 = vsel %vm766, %v771, %v677
        %v780 = vsel %vm766, %v772, %v678
        %v781 = vsel %vm766, %v773, %v679
        %v782 = vsel %vm766, %v774, %v680
        %v783 = vsel %vm749, %v758, %v775
        %v784 = vsel %vm749, %v759, %v776
        %v785 = vsel %vm749, %v760, %v777
        %v786 = vsel %vm749, %v761, %v778
        %v787 = vsel %vm749, %v762, %v779
        %v788 = vsel %vm749, %v763, %v780
        %v789 = vsel %vm749, %v764, %v781
        %v790 = vsel %vm749, %v765, %v782
        %vm791 = vcmp.eq.s32.totalorder %v690, 0
        %vm792 = vcmp.eq.s32.totalorder %v690, 2
        %vm793 = vmor %vm791, %vm792
        %vm794 = vcmp.eq.s32.totalorder %v690, 1
        %vm795 = vcmp.eq.s32.totalorder %v690, 3
        %vm796 = vmor %vm794, %vm795
        %v797 = vsel %vm796, 0.03125, 1.0
        %v798 = vsel %vm793, 0.03125, %v797
        %799 = vst [vmem:[%s326] sm:$0x3f] %v783
        %800 = vst [vmem:[%s326 + $0x8] sm:$0x3f] %v784
        %801 = vst [vmem:[%s326 + $0x10] sm:$0x3f] %v785
        %802 = vst [vmem:[%s326 + $0x18] sm:$0x3f] %v786
        %803 = vst [vmem:[%s326 + $0x20] sm:$0x3f] %v787
        %804 = vst [vmem:[%s326 + $0x28] sm:$0x3f] %v788
        %805 = vst [vmem:[%s326 + $0x30] sm:$0x3f] %v789
        %806 = vst [vmem:[%s326 + $0x38] sm:$0x3f] %v790
        %v807 = vmul.f32 %v673, %v798
        %v808 = vmul.f32 %v674, %v798
        %v809 = vmul.f32 %v675, %v798
        %v810 = vmul.f32 %v676, %v798
        %v811 = vmul.f32 %v677, %v798
        %v812 = vmul.f32 %v678, %v798
        %v813 = vmul.f32 %v679, %v798
        %v814 = vmul.f32 %v680, %v798
        %v815 = vpack.c.bf16 %v807, %v807
        %v816 = vpack.c.bf16 %v808, %v808
        %v817 = vpack.c.bf16 %v809, %v809
        %v818 = vpack.c.bf16 %v810, %v810
        %v819 = vpack.c.bf16 %v811, %v811
        %v820 = vpack.c.bf16 %v812, %v812
        %v821 = vpack.c.bf16 %v813, %v813
        %v822 = vpack.c.bf16 %v814, %v814
        %v831 = vunpack.c.l.b16 %v815
        %v832 = vunpack.c.l.b16 %v816
        %v833 = vunpack.c.l.b16 %v817
        %v834 = vunpack.c.l.b16 %v818
        %v835 = vunpack.c.l.b16 %v819
        %v836 = vunpack.c.l.b16 %v820
        %v837 = vunpack.c.l.b16 %v821
        %v838 = vunpack.c.l.b16 %v822
        %v839 = vpack.c.b16 %v832, %v831
        %v840 = vpack.c.b16 %v834, %v833
        %v841 = vpack.c.b16 %v836, %v835
        %v842 = vpack.c.b16 %v838, %v837
        %847 = vst [vmem:[%s336] sm:$0x77] %v839
        %848 = vst [vmem:[%s336 + $0x8] sm:$0x77] %v840
        %849 = vst [vmem:[%s336 + $0x10] sm:$0x77] %v841
        %850 = vst [vmem:[%s336 + $0x18] sm:$0x77] %v842
        %v851 = vmul.f32 %v783, %v798
        %v852 = vmul.f32 %v784, %v798
        %v853 = vmul.f32 %v785, %v798
        %v854 = vmul.f32 %v786, %v798
        %v855 = vmul.f32 %v787, %v798
        %v856 = vmul.f32 %v788, %v798
        %v857 = vmul.f32 %v789, %v798
        %v858 = vmul.f32 %v790, %v798
        %v859 = vpack.c.bf16 %v851, %v851
        %v860 = vpack.c.bf16 %v852, %v852
        %v861 = vpack.c.bf16 %v853, %v853
        %v862 = vpack.c.bf16 %v854, %v854
        %v863 = vpack.c.bf16 %v855, %v855
        %v864 = vpack.c.bf16 %v856, %v856
        %v865 = vpack.c.bf16 %v857, %v857
        %v866 = vpack.c.bf16 %v858, %v858
        %v875 = vunpack.c.l.b16 %v859
        %v876 = vunpack.c.l.b16 %v860
        %v877 = vunpack.c.l.b16 %v861
        %v878 = vunpack.c.l.b16 %v862
        %v879 = vunpack.c.l.b16 %v863
        %v880 = vunpack.c.l.b16 %v864
        %v881 = vunpack.c.l.b16 %v865
        %v882 = vunpack.c.l.b16 %v866
        %v883 = vpack.c.b16 %v876, %v875
        %v884 = vpack.c.b16 %v878, %v877
        %v885 = vpack.c.b16 %v880, %v879
        %v886 = vpack.c.b16 %v882, %v881
        %891 = vst [vmem:[%s346] sm:$0x77] %v883
        %892 = vst [vmem:[%s346 + $0x8] sm:$0x77] %v884
        %893 = vst [vmem:[%s346 + $0x10] sm:$0x77] %v885
        %894 = vst [vmem:[%s346 + $0x18] sm:$0x77] %v886
        %s895 = sand.u32 %s113, 1
        %s896 = scalar_lea.sflag [#allocation3], %s895
        %s897 = sand.u32 %s113, 1
        %s898 = smul.addr %s897, 64
        %s899 = scalar_lea.vmem [#allocation2], %s898
        %s900 = smul.u32 8, %s26
        %p901 = scmp.lt.s32.totalorder %s25, 1
        %s902 = scalar_select %p901, %s25, 1
        %p903 = scmp.lt.s32.totalorder %s900, 7
        %s904 = scalar_select %p903, %s900, 7
        %s905 = smul.addr %s902, 8
        %s906 = sadd.s32 %s904, %s905
        %s907 = smul.addr %s906, 8
        %s908 = scalar_lea.vmem %s4, %s907
        %s909 = smul.u32 8, %s26
        %p910 = scmp.lt.s32.totalorder %s25, 1
        %s911 = scalar_select %p910, %s25, 1
        %p912 = scmp.lt.s32.totalorder %s909, 7
        %s913 = scalar_select %p912, %s909, 7
        %s914 = smul.addr %s911, 8
        %s915 = sadd.s32 %s913, %s914
        %s916 = smul.addr %s915, 4
        %s917 = scalar_lea.vmem %s5, %s916
        %s918 = smul.u32 8, %s26
        %p919 = scmp.lt.s32.totalorder %s25, 1
        %s920 = scalar_select %p919, %s25, 1
        %p921 = scmp.lt.s32.totalorder %s918, 7
        %s922 = scalar_select %p921, %s918, 7
        %s923 = smul.addr %s920, 8
        %s924 = sadd.s32 %s922, %s923
        %s925 = smul.addr %s924, 4
        %s926 = scalar_lea.vmem %s6, %s925
        // Predicated region
        $region33: #{tpu_custom_call.1} parent=31 // pred_check
          %p927 = pneg %p123
        $region34: #{tpu_custom_call.1} parent=31 // pred_check_branch
          %929 = sbr.rel (%p927) target = $region36
        $region35: #{tpu_custom_call.1} parent=31 // pred_region
          %s930 = smul.u32 8, %s26
          %s932 = ssub.s32 1024, 1024
          %933 = vsyncadd %s896, %s932
          %s934 = smul.addr %s25, 8
          %s935 = sadd.s32 %s930, %s934
          %s936 = smul.addr %s935, 128
          %s937 = scalar_lea.hbm %s3, %s936
          %s939 = sshll.u32 %s899, 4
          %s940 = int_to_ptr.vmem [resolvable:$true] %s939
          %942 = dma.vmem_to_hbm [thread:$0]  %s940, 1024, %s937, %s896
        $region36: #{tpu_custom_call.1} parent=31 // pred_fallthru
          _
        // Predicated region
        $region37: #{tpu_custom_call.1} parent=31 // pred_check
          %p943 = pneg %p151
        $region38: #{tpu_custom_call.1} parent=31 // pred_check_branch
          %945 = sbr.rel (%p943) target = $region40
        $region39: #{tpu_custom_call.1} parent=31 // pred_region
          %s946 = smul.u32 8, %s26
        $region40: #{tpu_custom_call.1} parent=31 // pred_fallthru
          _
        // Predicated region
        $region41: #{tpu_custom_call.1} parent=31 // pred_check
          %p947 = pneg %p179
        $region42: #{tpu_custom_call.1} parent=31 // pred_check_branch
          %949 = sbr.rel (%p947) target = $region44
        $region43: #{tpu_custom_call.1} parent=31 // pred_region
          %s950 = smul.u32 8, %s26
        $region44: #{tpu_custom_call.1} parent=31 // pred_fallthru
          _
        // Predicated region
        $region45: #{tpu_custom_call.1} parent=31 // pred_check
          %p951 = pneg %p207
        $region46: #{tpu_custom_call.1} parent=31 // pred_check_branch
          %953 = sbr.rel (%p951) target = $region48
        $region47: #{tpu_custom_call.1} parent=31 // pred_region
          %s954 = smul.u32 8, %s26
        $region48: #{tpu_custom_call.1} parent=31 // pred_fallthru
          _
      $region32: #{tpu_custom_call.1} parent=5 // pred_fallthru
        _
      %p955 = scmp.le.s32.totalorder 2, %s16
      // Predicated region
      $region49: #{tpu_custom_call.1} parent=5 // pred_check
        %p956 = pneg %p955
      $region50: #{tpu_custom_call.1} parent=5 // pred_check_branch
        %958 = sbr.rel (%p956) target = $region52
      $region51: #{tpu_custom_call.1} parent=5 // pred_region
        %s959 = ssub.s32 %s16, 2
        // Predicated region
        $region53: #{tpu_custom_call.1} parent=51 // pred_check
          %p960 = pneg %p129
        $region54: #{tpu_custom_call.1} parent=51 // pred_check_branch
          %962 = sbr.rel (%p960) target = $region56
        $region55: #{tpu_custom_call.1} parent=51 // pred_region
          %s963 = sand.u32 %s114, 1
          %s964 = scalar_lea.sflag [#allocation3], %s963
          %s965 = sand.u32 %s114, 1
          %s966 = smul.addr %s965, 64
          %s967 = scalar_lea.vmem [#allocation2], %s966
          %968 = dma.done %s964, 1024
        $region56: #{tpu_custom_call.1} parent=51 // pred_fallthru
          _
        // Predicated region
        $region57: #{tpu_custom_call.1} parent=51 // pred_check
          %p969 = pneg %p157
        $region58: #{tpu_custom_call.1} parent=51 // pred_check_branch
          %971 = sbr.rel (%p969) target = $region60
        $region59: #{tpu_custom_call.1} parent=51 // pred_region
          %s972 = smul.u32 8, %s28
          %p973 = scmp.lt.s32.totalorder %s27, 1
          %s974 = scalar_select %p973, %s27, 1
          %p975 = scmp.lt.s32.totalorder %s972, 7
          %s976 = scalar_select %p975, %s972, 7
          %s977 = smul.addr %s974, 8
          %s978 = sadd.s32 %s976, %s977
          %s979 = smul.addr %s978, 8
          %s980 = scalar_lea.vmem %s4, %s979
        $region60: #{tpu_custom_call.1} parent=51 // pred_fallthru
          _
        // Predicated region
        $region61: #{tpu_custom_call.1} parent=51 // pred_check
          %p981 = pneg %p185
        $region62: #{tpu_custom_call.1} parent=51 // pred_check_branch
          %983 = sbr.rel (%p981) target = $region64
        $region63: #{tpu_custom_call.1} parent=51 // pred_region
          %s984 = smul.u32 8, %s28
          %p985 = scmp.lt.s32.totalorder %s27, 1
          %s986 = scalar_select %p985, %s27, 1
          %p987 = scmp.lt.s32.totalorder %s984, 7
          %s988 = scalar_select %p987, %s984, 7
          %s989 = smul.addr %s986, 8
          %s990 = sadd.s32 %s988, %s989
          %s991 = smul.addr %s990, 4
          %s992 = scalar_lea.vmem %s5, %s991
        $region64: #{tpu_custom_call.1} parent=51 // pred_fallthru
          _
        // Predicated region
        $region65: #{tpu_custom_call.1} parent=51 // pred_check
          %p993 = pneg %p213
        $region66: #{tpu_custom_call.1} parent=51 // pred_check_branch
          %995 = sbr.rel (%p993) target = $region68
        $region67: #{tpu_custom_call.1} parent=51 // pred_region
          %s996 = smul.u32 8, %s28
          %p997 = scmp.lt.s32.totalorder %s27, 1
          %s998 = scalar_select %p997, %s27, 1
          %p999 = scmp.lt.s32.totalorder %s996, 7
          %s1000 = scalar_select %p999, %s996, 7
          %s1001 = smul.addr %s998, 8
          %s1002 = sadd.s32 %s1000, %s1001
          %s1003 = smul.addr %s1002, 4
          %s1004 = scalar_lea.vmem %s6, %s1003
        $region68: #{tpu_custom_call.1} parent=51 // pred_fallthru
          _
      $region52: #{tpu_custom_call.1} parent=5 // pred_fallthru
        _
    $region6: #{tpu_custom_call.1} parent=1 // loop_footer
      %s20 = sadd.s32 1, %s16
    $region7: #{tpu_custom_call.1} parent=1 // loop_footer_branch
      %15 = sbr.rel target = $region3
    $region8: #{tpu_custom_call.1} parent=1 // loop_exit
      _
    %1005 = vsyncpa [#allocation3], 1
    %s1006 = scalar_lea.sflag [#allocation3], 1
    %1007 = vsyncpa %s1006, 1

</llo_original>
